<compile_context>
chip_gen: v7x
topology: tpu7x:2x2x1
jax: 0.10.0
libtpu: 0.0.40
codegen_flags: <defaults>
</compile_context>

<pallas_src>
import functools

import jax
import jax.numpy as jnp
from jax import lax
from jax.experimental import pallas as pl
from jax.experimental.pallas import tpu as pltpu


# ----------------------------- Pallas kernel --------------------------------

def encoder_fused_kernel(p_ref, wc_ref, wd_ref, b_ref, o_ref, acc_ref):
    """Fused: conv(7x7/s2 as im2col matmul) + ReLU + partial GAP + dense.

    p_ref   : [tb, hw_tile, Kd]  bf16 im2col patch tile (batch tile x HW tile)
    wc_ref  : [Kd, Cout]         bf16 flattened conv weight
    wd_ref  : [Cout, D]          bf16 dense weight (1/HW mean scale folded in)
    b_ref   : [1, D]             f32 dense bias
    o_ref   : [tb, D]            f32 output (written only at last HW step)
    acc_ref : [tb, Cout]         f32 GAP accumulator scratch
    """
    hw = pl.program_id(1)

    @pl.when(hw == 0)
    def _init():
        acc_ref[...] = jnp.zeros_like(acc_ref)

    tb, hw_tile, kd = p_ref.shape

    # Conv stem as one tall-M MXU matmul (bf16 operands, f32 accumulate).
    # hw_tile is a multiple of 8, so merging (tb, hw_tile) is sublane-aligned.
    p = p_ref[...].reshape(tb * hw_tile, kd)
    conv = jnp.dot(p, wc_ref[...], preferred_element_type=jnp.float32)
    conv = jnp.maximum(conv, 0.0)                          # f32 ReLU on the VPU

    # Partial global-average-pool: sum this HW tile (cross-sublane reduction on
    # the XLU; lane dim Cout untouched).  1/HW is folded into wd_ref.
    acc_ref[...] += conv.reshape(tb, hw_tile, -1).sum(axis=1)

    @pl.when(hw == pl.num_programs(1) - 1)
    def _finalize():
        pooled = acc_ref[...].astype(jnp.bfloat16)          # [tb, Cout]
        out = jnp.dot(pooled, wd_ref[...],
                      preferred_element_type=jnp.float32) + b_ref[...]
        o_ref[...] = out.astype(o_ref.dtype)                # D=1024: lane-dense


# ------------------------------- JAX glue ------------------------------------

def im2col_nchw(x, kh, kw, stride, pad):
    """NCHW -> patches [B, Ho*Wo, kh*kw*C] with (kh, kw, C) flatten order.

    Emits patches directly in the kernel's final layout (one small NCHW->NHWC
    transpose + slice-concat); no 6-D transpose.  Runs under jit.
    """
    B, C, H, W = x.shape
    Ho = (H + 2 * pad - kh) // stride + 1
    Wo = (W + 2 * pad - kw) // stride + 1
    xp = jnp.pad(x, ((0, 0), (0, 0), (pad, pad), (pad, pad)))
    xp = xp.transpose(0, 2, 3, 1)                           # [B, Hp, Wp, C]
    cols = []
    for i in range(kh):
        for j in range(kw):
            cols.append(
                xp[:, i:i + stride * Ho:stride, j:j + stride * Wo:stride, :])
    patches = jnp.concatenate(cols, axis=-1)                # [B, Ho, Wo, kh*kw*C]
    return patches.reshape(B, Ho * Wo, kh * kw * C), Ho, Wo


def _pick_hw_tile(HW, tb, Kd, Cout, target_rows=2048, budget_bytes=20 << 20):
    """Largest multiple-of-8 divisor of HW whose (tb*hw_tile) tile stays within
    a per-generation-safe VMEM budget and near the target M rows (>=512 keeps
    the MXU weight-push amortized on v6e/v7x)."""
    bytes_per_row = Kd * 2 * 2 + Cout * 4      # bf16 patches (x2 bufs) + f32 conv
    max_rows = max(8, budget_bytes // max(1, bytes_per_row * tb))
    target = min(target_rows, max_rows)
    best = None
    for t in range(8, HW + 1, 8):
        if HW % t == 0 and t <= target:
            best = t
    return best if best is not None else HW


@functools.partial(jax.jit, static_argnames=("tb", "hw_tile"))
def encoder_forward(x, params, tb=None, hw_tile=None):
    w_conv, w_dense, b_dense = params
    B, Cin, H, W = x.shape
    Cout = w_conv.shape[0]
    D = w_dense.shape[0]
    kh, kw, stride, pad = 7, 7, 2, 3

    # Batch tiling: keep >=2 parallel tiles when B allows (v7x dual TC),
    # with tb a multiple of 8 whenever tb != B (block-shape rule).
    if tb is None:
        tb = B if B < 8 else 8
    assert B % tb == 0
    if tb != B:
        assert tb % 8 == 0, "tb must be a multiple of 8 when tb != B"

    # bf16 operands for the MXU; accumulation stays f32 inside the kernel.
    xb = x.astype(jnp.bfloat16)
    patches, Ho, Wo = im2col_nchw(xb, kh, kw, stride, pad)   # [B, HW, Kd] bf16
    HW = Ho * Wo
    Kd = Cin * kh * kw

    if hw_tile is None:
        hw_tile = _pick_hw_tile(HW, tb, Kd, Cout)
    assert HW % hw_tile == 0
    assert hw_tile == HW or hw_tile % 8 == 0

    # Conv weight flattened to match the (kh, kw, Cin) patch row order.
    w_flat = w_conv.transpose(2, 3, 1, 0).reshape(Kd, Cout).astype(jnp.bfloat16)
    # 1/HW mean scale folded into the dense weight (removes per-element scaling).
    w_d = (w_dense.T / float(HW)).astype(jnp.bfloat16)       # [Cout, D]
    b_d = b_dense.reshape(1, D).astype(jnp.float32)          # [1, D]

    cost = pl.CostEstimate(
        flops=2 * B * HW * Kd * Cout + 2 * B * Cout * D,
        transcendentals=0,
        bytes_accessed=(patches.size * 2 + w_flat.size * 2 + w_d.size * 2
                        + b_d.size * 4 + B * D * 4),
    )

    out = pl.pallas_call(
        encoder_fused_kernel,
        out_shape=jax.ShapeDtypeStruct((B, D), jnp.float32),
        grid=(B // tb, HW // hw_tile),
        in_specs=[
            pl.BlockSpec((tb, hw_tile, Kd), lambda b, h: (b, h, 0)),  # patches
            pl.BlockSpec((Kd, Cout), lambda b, h: (0, 0)),            # conv W
            pl.BlockSpec((Cout, D), lambda b, h: (0, 0)),             # dense W
            pl.BlockSpec((1, D), lambda b, h: (0, 0)),                # bias
        ],
        out_specs=pl.BlockSpec((tb, D), lambda b, h: (b, 0)),
        scratch_shapes=[pltpu.VMEM((tb, Cout), jnp.float32)],
        compiler_params=pltpu.CompilerParams(
            dimension_semantics=("parallel", "arbitrary"),
            vmem_limit_bytes=48 * 1024 * 1024),
        cost_estimate=cost,
    )(patches, w_flat, w_d, b_d)
    return out


def reference_forward(x, params):
    """Pure-JAX reference of the same math (same bf16-in / f32-acc recipe)."""
    w_conv, w_dense, b_dense = params
    xb = x.astype(jnp.bfloat16)
    wcb = w_conv.astype(jnp.bfloat16)
    conv = lax.conv_general_dilated(
        xb, wcb, window_strides=(2, 2), padding=((3, 3), (3, 3)),
        dimension_numbers=("NCHW", "OIHW", "NCHW"),
        preferred_element_type=jnp.float32)
    conv = jnp.maximum(conv, 0.0)
    pooled = conv.mean(axis=(2, 3))                          # [B, Cout] f32
    out = jnp.dot(pooled.astype(jnp.bfloat16),
                  w_dense.T.astype(jnp.bfloat16),
                  preferred_element_type=jnp.float32) + b_dense.astype(jnp.float32)
    return out


# --------------------------------- main ---------------------------------------

if __name__ == "__main__":
    key = jax.random.PRNGKey(0)
    kx, kw1, kw2, kb = jax.random.split(key, 4)

    B, Cin, H, W = 2, 3, 16, 16
    Cout, D = 64, 1024

    x = jax.random.normal(kx, (B, Cin, H, W), dtype=jnp.float32)
    w_conv = 0.05 * jax.random.normal(kw1, (Cout, Cin, 7, 7), dtype=jnp.float32)
    w_dense = 0.05 * jax.random.normal(kw2, (D, Cout), dtype=jnp.float32)
    b_dense = 0.01 * jax.random.normal(kb, (D,), dtype=jnp.float32)
    params = (w_conv, w_dense, b_dense)

    # hw_tile=16 -> 4 HW accumulation steps at this toy size, exercising the
    # init/accumulate/finalize path (auto-pick would use a single step here).
    out = encoder_forward(x, params, hw_tile=16)
    out = jax.block_until_ready(out)
    assert out.shape == (B, D)

    ref = reference_forward(x, params)
    max_err = float(jnp.max(jnp.abs(out - ref)))
    assert jnp.allclose(out, ref, atol=1e-2, rtol=1e-2), (
        f"mismatch vs reference (max abs err {max_err:.3e})")

    print("KERNEL_OK")
</pallas_src>

<mosaic_0001>
module attributes {stable_mosaic.version = 11 : i64} {
  func.func @encoder_fused_kernel(%arg0: i32, %arg1: i32, %arg2: memref<2x16x147xbf16, #tpu.memory_space<vmem>>, %arg3: memref<147x64xbf16, #tpu.memory_space<vmem>>, %arg4: memref<64x1024xbf16, #tpu.memory_space<vmem>>, %arg5: memref<1x1024xf32, #tpu.memory_space<vmem>>, %arg6: memref<2x1024xf32, #tpu.memory_space<vmem>>, %arg7: memref<2x64xf32, #tpu.memory_space<vmem>>) attributes {dimension_semantics = [#tpu.dimension_semantics<parallel>, #tpu.dimension_semantics<arbitrary>], iteration_bounds = array<i64: 1, 4>, scalar_prefetch = 0 : i64, scratch_operands = 1 : i64, tpu.core_type = #tpu.core_type<tc>, window_params = [{transform_indices = @transform_0, window_bounds = array<i64: 2, 16, 147>}, {pipeline_mode = #tpu.pipeline_mode<synchronous>, transform_indices = @transform_1, window_bounds = array<i64: 147, 64>}, {pipeline_mode = #tpu.pipeline_mode<synchronous>, transform_indices = @transform_2, window_bounds = array<i64: 64, 1024>}, {pipeline_mode = #tpu.pipeline_mode<synchronous>, transform_indices = @transform_3, window_bounds = array<i64: 1, 1024>}, {transform_indices = @transform_4, window_bounds = array<i64: 2, 1024>}]} {
    %c0_i32 = arith.constant 0 : i32
    %0 = arith.cmpi eq, %arg1, %c0_i32 : i32
    %1 = arith.extui %0 : i1 to i32
    %c0_i32_0 = arith.constant 0 : i32
    %2 = arith.cmpi ne, %1, %c0_i32_0 : i32
    scf.if %2 {
      %cst_12 = arith.constant 0.000000e+00 : f32
      %17 = vector.broadcast %cst_12 : f32 to vector<2x64xf32>
      %c0_13 = arith.constant 0 : index
      %c0_14 = arith.constant 0 : index
      %18 = vector.load %arg7[%c0_13, %c0_14] : memref<2x64xf32, #tpu.memory_space<vmem>>, vector<2x64xf32>
      tpu.vector_store %arg7[%c0_13, %c0_14], %17 {strides = array<i32>} : memref<2x64xf32, #tpu.memory_space<vmem>>, vector<2x64xf32>,
    } else {
    }
    %c0 = arith.constant 0 : index
    %c0_1 = arith.constant 0 : index
    %c0_2 = arith.constant 0 : index
    %3 = vector.load %arg2[%c0, %c0_1, %c0_2] : memref<2x16x147xbf16, #tpu.memory_space<vmem>>, vector<2x16x147xbf16>
    %4 = vector.shape_cast %3 : vector<2x16x147xbf16> to vector<32x147xbf16>
    %c0_3 = arith.constant 0 : index
    %c0_4 = arith.constant 0 : index
    %5 = vector.load %arg3[%c0_3, %c0_4] : memref<147x64xbf16, #tpu.memory_space<vmem>>, vector<147x64xbf16>
    %cst = arith.constant dense<0.000000e+00> : vector<32x64xf32>
    %6 = tpu.matmul %4, %5, %cst {dimension_numbers = #tpu.dot_dimension_numbers<[1], [0], [0], [1], [0, 0, 1, 1], [], []>} : vector<32x147xbf16>, vector<147x64xbf16>, vector<32x64xf32> -> vector<32x64xf32>
    %cst_5 = arith.constant 0.000000e+00 : f32
    %7 = vector.broadcast %cst_5 : f32 to vector<32x64xf32>
    %8 = arith.maximumf %6, %7 : vector<32x64xf32>
    %c0_6 = arith.constant 0 : index
    %c0_7 = arith.constant 0 : index
    %9 = vector.load %arg7[%c0_6, %c0_7] : memref<2x64xf32, #tpu.memory_space<vmem>>, vector<2x64xf32>
    %10 = vector.shape_cast %8 : vector<32x64xf32> to vector<2x16x64xf32>
    %cst_8 = arith.constant dense<0.000000e+00> : vector<2x64xf32>
    %11 = vector.multi_reduction <add>, %10, %cst_8 [1] : vector<2x16x64xf32> to vector<2x64xf32>
    %12 = arith.addf %9, %11 : vector<2x64xf32>
    %c0_9 = arith.constant 0 : index
    %c0_10 = arith.constant 0 : index
    %13 = vector.load %arg7[%c0_9, %c0_10] : memref<2x64xf32, #tpu.memory_space<vmem>>, vector<2x64xf32>
    tpu.vector_store %arg7[%c0_9, %c0_10], %12 {strides = array<i32>} : memref<2x64xf32, #tpu.memory_space<vmem>>, vector<2x64xf32>,
    %c3_i32 = arith.constant 3 : i32
    %14 = arith.cmpi eq, %arg1, %c3_i32 : i32
    %15 = arith.extui %14 : i1 to i32
    %c0_i32_11 = arith.constant 0 : i32
    %16 = arith.cmpi ne, %15, %c0_i32_11 : i32
    scf.if %16 {
      %c0_12 = arith.constant 0 : index
      %c0_13 = arith.constant 0 : index
      %17 = vector.load %arg7[%c0_12, %c0_13] : memref<2x64xf32, #tpu.memory_space<vmem>>, vector<2x64xf32>
      %18 = arith.truncf %17 : vector<2x64xf32> to vector<2x64xbf16>
      %c0_14 = arith.constant 0 : index
      %c0_15 = arith.constant 0 : index
      %19 = vector.load %arg4[%c0_14, %c0_15] : memref<64x1024xbf16, #tpu.memory_space<vmem>>, vector<64x1024xbf16>
      %cst_16 = arith.constant dense<0.000000e+00> : vector<2x1024xf32>
      %20 = tpu.matmul %18, %19, %cst_16 {dimension_numbers = #tpu.dot_dimension_numbers<[1], [0], [0], [1], [0, 0, 1, 1], [], []>} : vector<2x64xbf16>, vector<64x1024xbf16>, vector<2x1024xf32> -> vector<2x1024xf32>
      %c0_17 = arith.constant 0 : index
      %c0_18 = arith.constant 0 : index
      %21 = vector.load %arg5[%c0_17, %c0_18] : memref<1x1024xf32, #tpu.memory_space<vmem>>, vector<1x1024xf32>
      %22 = vector.broadcast %21 : vector<1x1024xf32> to vector<2x1024xf32>
      %23 = arith.addf %20, %22 : vector<2x1024xf32>
      %c0_19 = arith.constant 0 : index
      %c0_20 = arith.constant 0 : index
      %24 = vector.load %arg6[%c0_19, %c0_20] : memref<2x1024xf32, #tpu.memory_space<vmem>>, vector<2x1024xf32>
      tpu.vector_store %arg6[%c0_19, %c0_20], %23 {strides = array<i32>} : memref<2x1024xf32, #tpu.memory_space<vmem>>, vector<2x1024xf32>,
    } else {
    }
    return
  }
  func.func @transform_0(%arg0: i32, %arg1: i32) -> (i32, i32, i32) {
    %c0_i32 = arith.constant 0 : i32
    %c0_i32_0 = arith.constant 0 : i32
    return %arg0, %arg1, %c0_i32 : i32, i32, i32
  }
  func.func @transform_1(%arg0: i32, %arg1: i32) -> (i32, i32) {
    %c0_i32 = arith.constant 0 : i32
    %c0_i32_0 = arith.constant 0 : i32
    %c0_i32_1 = arith.constant 0 : i32
    return %c0_i32, %c0_i32_0 : i32, i32
  }
  func.func @transform_2(%arg0: i32, %arg1: i32) -> (i32, i32) {
    %c0_i32 = arith.constant 0 : i32
    %c0_i32_0 = arith.constant 0 : i32
    %c0_i32_1 = arith.constant 0 : i32
    return %c0_i32, %c0_i32_0 : i32, i32
  }
  func.func @transform_3(%arg0: i32, %arg1: i32) -> (i32, i32) {
    %c0_i32 = arith.constant 0 : i32
    %c0_i32_0 = arith.constant 0 : i32
    %c0_i32_1 = arith.constant 0 : i32
    return %c0_i32, %c0_i32_0 : i32, i32
  }
  func.func @transform_4(%arg0: i32, %arg1: i32) -> (i32, i32) {
    %c0_i32 = arith.constant 0 : i32
    %c0_i32_0 = arith.constant 0 : i32
    return %arg0, %c0_i32 : i32, i32
  }
}

</mosaic_0001>

<llo_original>
// kernel: encoder_forward.1
$region0: #{encoder_forward.1}
  #allocation0 [shape = 'u32[]', space=smem, size = 0x4, offset = 0x4, fixed_abs, tag = 'smem constant byte address 0x4 - core index']
  #allocation1 [shape = 'u32[144,128]{1,0:T(1,128)}', space=vmem, size = 0x12000, scoped, tag = 'internal scratch']
  #allocation2 [shape = 'f32[2,64]{1,0:T(2,128)}', space=vmem, size = 0x400, scoped, tag = 'scratch operand']
  %s0 = inlined_call_operand.vmem [shape: bf16[2,64,147], index: 0, kind: input, shape index: {}]
  %s1 = inlined_call_operand.vmem [shape: bf16[147,64], index: 1, kind: input, shape index: {}]
  %s2 = inlined_call_operand.vmem [shape: bf16[64,1024], index: 2, kind: input, shape index: {}]
  %s3 = inlined_call_operand.vmem [shape: f32[1,1024], index: 3, kind: input, shape index: {}]
  %s4 = inlined_call_operand.hbm [shape: f32[2,1024], index: 4, kind: output, shape index: {}]
  %s5 = sld [smem:[#allocation0]]
  $region95: #{encoder_forward.1} parent=0
    _
  %s7 = ssub.s32 1, %s5
  %s8 = scalar_select 0, %s7, %s5
  $region1: #{encoder_forward.1} parent=0
    #allocation3 [shape = 'u8[32768]{0}', space=vmem, size = 0x8000, scoped, tag = 'input window, operand 0']
    #allocation4 [shape = 'u8[8192]{0}', space=vmem, size = 0x2000, scoped, tag = 'output window, operand 0, single buffered']
    #allocation5 [shape = 's32[2]{0}', space=sflag, size = 0x8, scoped, tag = 'scoped memory for encoder_forward.1']
    %9 = vsyncpa [#allocation5], 0
    loop: start=0, step=1, limit=6
    $region2: #{encoder_forward.1} parent=1 // loop_pre_header
      _
    $region3: #{encoder_forward.1} parent=1 // loop_header
      %s11 = sphi 0, %s15
      %p12 = scmp.ge.s32.totalorder %s11, 6
      %s18 = sphi 0, %s30
      %s19 = sphi 0, %s26
      %s20 = sphi 0, %s18
      %s21 = sphi 0, %s19
      %s22 = sphi 0, %s20
      %s23 = sphi 0, %s21
      %s35 = sphi 0, %s37
      %s38 = sphi 0, %s35
      %s39 = sphi 0, %s38
      %s55 = sphi 0, %s39
      %s59 = sphi 0, %s59
      %s61 = sphi 0, %s59
      %s62 = sphi 0, %s61
      %s76 = sphi 0, %s62
      %s80 = sphi 0, %s80
      %s82 = sphi 0, %s80
      %s83 = sphi 0, %s82
      %s97 = sphi 0, %s83
      %s101 = sphi 0, %s101
      %s103 = sphi 0, %s101
      %s104 = sphi 0, %s103
      %s118 = sphi 0, %s104
      %s124 = sphi 0, %s126
      %s127 = sphi 0, %s124
      %s128 = sphi 0, %s127
      %s144 = sphi 0, %s128
    $region4: #{encoder_forward.1} parent=1 // loop_header_branch
      %14 = sbr.rel (%p12) target = $region8
    $region5: #{encoder_forward.1} parent=1 // loop_body
      %s16 = ssub.s32 %s11, 1
      %s17 = ssub.s32 %s11, 2
      %s24 = sadd.s32 1, %s19
      %p25 = scmp.ge.s32.totalorder %s24, 4
      %s26 = scalar_select %p25, 0, %s24
      %s27 = sadd.s32 1, %s18
      %s28 = scalar_select %p25, %s27, %s18
      %p29 = scmp.ge.s32.totalorder %s28, 1
      %s30 = scalar_select %p29, 0, %s28
      %s31 = ssub.s32 %s18, %s30
      %s32 = ssub.s32 %s19, %s26
      %s33 = sor.u32 %s31, %s32
      %p34 = scmp.eq.s32.totalorder %s33, 0
      %s36 = sadd.s32 %s35, 1
      %s37 = scalar_select %p34, %s35, %s36
      %p40 = pneg %p34
      %p41 = scmp.eq.s32.totalorder %s11, 3
      %p42 = por %p40, %p41
      %p43 = scmp.ne.s32.totalorder %s35, %s38
      %p44 = scmp.eq.s32.totalorder %s11, 0
      %p45 = por %p43, %p44
      %p46 = scmp.ne.s32.totalorder %s35, %s38
      %p47 = scmp.eq.s32.totalorder %s16, 3
      %p48 = por %p46, %p47
      %p49 = scmp.ne.s32.totalorder %s38, %s39
      %p50 = scmp.eq.s32.totalorder %s16, 0
      %p51 = por %p49, %p50
      %p52 = scmp.ne.s32.totalorder %s38, %s39
      %p53 = scmp.eq.s32.totalorder %s17, 3
      %p54 = por %p52, %p53
      %p56 = scmp.ne.s32.totalorder %s39, %s55
      %p57 = scmp.eq.s32.totalorder %s17, 0
      %p58 = por %p56, %p57
      %s60 = sadd.s32 %s59, 1
      %p63 = scmp.eq.s32.totalorder %s11, 3
      %p64 = scmp.ne.s32.totalorder %s59, %s61
      %p65 = scmp.eq.s32.totalorder %s11, 0
      %p66 = por %p64, %p65
      %p67 = scmp.ne.s32.totalorder %s59, %s61
      %p68 = scmp.eq.s32.totalorder %s16, 3
      %p69 = por %p67, %p68
      %p70 = scmp.ne.s32.totalorder %s61, %s62
      %p71 = scmp.eq.s32.totalorder %s16, 0
      %p72 = por %p70, %p71
      %p73 = scmp.ne.s32.totalorder %s61, %s62
      %p74 = scmp.eq.s32.totalorder %s17, 3
      %p75 = por %p73, %p74
      %p77 = scmp.ne.s32.totalorder %s62, %s76
      %p78 = scmp.eq.s32.totalorder %s17, 0
      %p79 = por %p77, %p78
      %s81 = sadd.s32 %s80, 1
      %p84 = scmp.eq.s32.totalorder %s11, 3
      %p85 = scmp.ne.s32.totalorder %s80, %s82
      %p86 = scmp.eq.s32.totalorder %s11, 0
      %p87 = por %p85, %p86
      %p88 = scmp.ne.s32.totalorder %s80, %s82
      %p89 = scmp.eq.s32.totalorder %s16, 3
      %p90 = por %p88, %p89
      %p91 = scmp.ne.s32.totalorder %s82, %s83
      %p92 = scmp.eq.s32.totalorder %s16, 0
      %p93 = por %p91, %p92
      %p94 = scmp.ne.s32.totalorder %s82, %s83
      %p95 = scmp.eq.s32.totalorder %s17, 3
      %p96 = por %p94, %p95
      %p98 = scmp.ne.s32.totalorder %s83, %s97
      %p99 = scmp.eq.s32.totalorder %s17, 0
      %p100 = por %p98, %p99
      %s102 = sadd.s32 %s101, 1
      %p105 = scmp.eq.s32.totalorder %s11, 3
      %p106 = scmp.ne.s32.totalorder %s101, %s103
      %p107 = scmp.eq.s32.totalorder %s11, 0
      %p108 = por %p106, %p107
      %p109 = scmp.ne.s32.totalorder %s101, %s103
      %p110 = scmp.eq.s32.totalorder %s16, 3
      %p111 = por %p109, %p110
      %p112 = scmp.ne.s32.totalorder %s103, %s104
      %p113 = scmp.eq.s32.totalorder %s16, 0
      %p114 = por %p112, %p113
      %p115 = scmp.ne.s32.totalorder %s103, %s104
      %p116 = scmp.eq.s32.totalorder %s17, 3
      %p117 = por %p115, %p116
      %p119 = scmp.ne.s32.totalorder %s104, %s118
      %p120 = scmp.eq.s32.totalorder %s17, 0
      %p121 = por %p119, %p120
      %s122 = ssub.s32 %s18, %s30
      %p123 = scmp.eq.s32.totalorder %s122, 0
      %s125 = sadd.s32 %s124, 1
      %s126 = scalar_select %p123, %s124, %s125
      %p129 = pneg %p123
      %p130 = scmp.eq.s32.totalorder %s11, 3
      %p131 = por %p129, %p130
      %p132 = scmp.ne.s32.totalorder %s124, %s127
      %p133 = scmp.eq.s32.totalorder %s11, 0
      %p134 = por %p132, %p133
      %p135 = scmp.ne.s32.totalorder %s124, %s127
      %p136 = scmp.eq.s32.totalorder %s16, 3
      %p137 = por %p135, %p136
      %p138 = scmp.ne.s32.totalorder %s127, %s128
      %p139 = scmp.eq.s32.totalorder %s16, 0
      %p140 = por %p138, %p139
      %p141 = scmp.ne.s32.totalorder %s127, %s128
      %p142 = scmp.eq.s32.totalorder %s17, 3
      %p143 = por %p141, %p142
      %p145 = scmp.ne.s32.totalorder %s128, %s144
      %p146 = scmp.eq.s32.totalorder %s17, 0
      %p147 = por %p145, %p146
      %p148 = scmp.le.s32.totalorder 1, %s11
      %p149 = scmp.lt.s32.totalorder %s11, 5
      %p150 = pnand %p148, %p149
      %p151 = pneg %p150
      // Predicated region
      $region9: #{encoder_forward.1} parent=5 // pred_check
        _
      $region10: #{encoder_forward.1} parent=5 // pred_check_branch
        %153 = sbr.rel (%p150) target = $region12
      $region11: #{encoder_forward.1} parent=5 // pred_region
        %s154 = ssub.s32 %s11, 1
        // Predicated region
        $region13: #{encoder_forward.1} parent=11 // pred_check
          %p155 = pneg %p72
        $region14: #{encoder_forward.1} parent=11 // pred_check_branch
          %157 = sbr.rel (%p155) target = $region16
        $region15: #{encoder_forward.1} parent=11 // pred_region
          _
        $region16: #{encoder_forward.1} parent=11 // pred_fallthru
          _
        // Predicated region
        $region17: #{encoder_forward.1} parent=11 // pred_check
          %p158 = pneg %p93
        $region18: #{encoder_forward.1} parent=11 // pred_check_branch
          %160 = sbr.rel (%p158) target = $region20
        $region19: #{encoder_forward.1} parent=11 // pred_region
          _
        $region20: #{encoder_forward.1} parent=11 // pred_fallthru
          _
        // Predicated region
        $region21: #{encoder_forward.1} parent=11 // pred_check
          %p161 = pneg %p114
        $region22: #{encoder_forward.1} parent=11 // pred_check_branch
          %163 = sbr.rel (%p161) target = $region24
        $region23: #{encoder_forward.1} parent=11 // pred_region
          _
        $region24: #{encoder_forward.1} parent=11 // pred_fallthru
          _
      $region12: #{encoder_forward.1} parent=5 // pred_fallthru
        _
      %p164 = scmp.lt.s32.totalorder %s11, 4
      // Predicated region
      $region25: #{encoder_forward.1} parent=5 // pred_check
        %p165 = pneg %p164
      $region26: #{encoder_forward.1} parent=5 // pred_check_branch
        %167 = sbr.rel (%p165) target = $region28
      $region27: #{encoder_forward.1} parent=5 // pred_region
        // Predicated region
        $region29: #{encoder_forward.1} parent=27 // pred_check
          %p168 = pneg %p45
        $region30: #{encoder_forward.1} parent=27 // pred_check_branch
          %170 = sbr.rel (%p168) target = $region32
        $region31: #{encoder_forward.1} parent=27 // pred_region
          %s171 = sand.u32 %s35, 1
          %s172 = sand.u32 %s35, 1
          %s173 = smul.addr %s172, 32
          %s174 = scalar_lea.vmem [#allocation3], %s173
          %s175 = smul.u32 2, %s18
          %s176 = smul.u32 2, %s19
          %s177 = smul.addr %s176, 2
          %s178 = smul.addr %s175, 16
          %s179 = sadd.s32 %s177, %s178
          %s180 = smul.addr %s179, 4
          %s181 = scalar_lea.vmem %s0, %s180
          // Predicated region
          $region33: #{encoder_forward.1} parent=31 // pred_check
            _
          $region34: #{encoder_forward.1} parent=31 // pred_check_branch
            %183 = sbr.rel (0) target = $region36
          $region35: #{encoder_forward.1} parent=31 // pred_region
            // Predicated region
            $region37: #{encoder_forward.1} parent=35 // pred_check
              _
            $region38: #{encoder_forward.1} parent=35 // pred_check_branch
              %185 = sbr.rel (0) target = $region40
            $region39: #{encoder_forward.1} parent=35 // pred_region
              // Predicated region
              $region52: #{encoder_forward.1} parent=39 // pred_check
                _
              $region53: #{encoder_forward.1} parent=39 // pred_check_branch
                %206 = sbr.rel (0) target = $region55
              $region54: #{encoder_forward.1} parent=39 // pred_region
                loop: start=0, step=1, limit=1
                $region56: #{encoder_forward.1} parent=54 // loop_pre_header
                  _
                $region57: #{encoder_forward.1} parent=54 // loop_header
                  %s208 = sphi 0, %s212
                  %p209 = scmp.ge.s32.totalorder %s208, 1
                  %s213 = sphi %s181, %s181
                  %s214 = sphi %s174, %s174
                $region58: #{encoder_forward.1} parent=54 // loop_header_branch
                  %211 = sbr.rel (%p209) target = $region62
                $region59: #{encoder_forward.1} parent=54 // loop_body
                  %v215 = vld [vmem:[%s213] sm:$0xff]
                  %216 = vst [vmem:[%s214] sm:$0xff] %v215
                  %v217 = vld [vmem:[%s213 + $0x8] sm:$0xff]
                  %218 = vst [vmem:[%s214 + $0x8] sm:$0xff] %v217
                  %v219 = vld [vmem:[%s213 + $0x40] sm:$0xff]
                  %220 = vst [vmem:[%s214 + $0x10] sm:$0xff] %v219
                  %v221 = vld [vmem:[%s213 + $0x48] sm:$0xff]
                  %222 = vst [vmem:[%s214 + $0x18] sm:$0xff] %v221
                $region60: #{encoder_forward.1} parent=54 // loop_footer
                  %s212 = sadd.s32 1, %s208
                $region61: #{encoder_forward.1} parent=54 // loop_footer_branch
                  %207 = sbr.rel target = $region57
                $region62: #{encoder_forward.1} parent=54 // loop_exit
                  _
              $region55: #{encoder_forward.1} parent=39 // pred_fallthru
                _
              // Predicated region
              $region63: #{encoder_forward.1} parent=39 // pred_check
                _
              $region64: #{encoder_forward.1} parent=39 // pred_check_branch
                %224 = sbr.rel target = $region66
              $region65: #{encoder_forward.1} parent=39 // pred_region
                _
              $region66: #{encoder_forward.1} parent=39 // pred_fallthru
                _
            $region40: #{encoder_forward.1} parent=35 // pred_fallthru
              _
            // Predicated region
            $region41: #{encoder_forward.1} parent=35 // pred_check
              _
            $region42: #{encoder_forward.1} parent=35 // pred_check_branch
              %187 = sbr.rel target = $region44
            $region43: #{encoder_forward.1} parent=35 // pred_region
              loop: start=0, step=1, limit=1
              $region45: #{encoder_forward.1} parent=43 // loop_pre_header
                _
              $region46: #{encoder_forward.1} parent=43 // loop_header
                %s190 = sphi 0, %s194
                %p191 = scmp.ge.s32.totalorder %s190, 1
                %s195 = sphi %s181, %s181
                %s196 = sphi %s174, %s174
              $region47: #{encoder_forward.1} parent=43 // loop_header_branch
                %193 = sbr.rel (%p191) target = $region51
              $region48: #{encoder_forward.1} parent=43 // loop_body
                %v197 = vld [vmem:[%s195] sm:$0xff]
                %198 = vst [vmem:[%s196] sm:$0xff] %v197
                %v199 = vld [vmem:[%s195 + $0x8] sm:$0xff]
                %200 = vst [vmem:[%s196 + $0x8] sm:$0xff] %v199
                %v201 = vld [vmem:[%s195 + $0x40] sm:$0xff]
                %202 = vst [vmem:[%s196 + $0x10] sm:$0xff] %v201
                %v203 = vld [vmem:[%s195 + $0x48] sm:$0xff]
                %204 = vst [vmem:[%s196 + $0x18] sm:$0xff] %v203
              $region49: #{encoder_forward.1} parent=43 // loop_footer
                %s194 = sadd.s32 1, %s190
              $region50: #{encoder_forward.1} parent=43 // loop_footer_branch
                %189 = sbr.rel target = $region46
              $region51: #{encoder_forward.1} parent=43 // loop_exit
                _
            $region44: #{encoder_forward.1} parent=35 // pred_fallthru
              _
          $region36: #{encoder_forward.1} parent=31 // pred_fallthru
            _
          %225 = vnop
        $region32: #{encoder_forward.1} parent=27 // pred_fallthru
          _
      $region28: #{encoder_forward.1} parent=5 // pred_fallthru
        _
      %p226 = scmp.le.s32.totalorder 1, %s11
      %p227 = scmp.lt.s32.totalorder %s11, 5
      %p228 = pnand %p226, %p227
      %p229 = pneg %p228
      // Predicated region
      $region67: #{encoder_forward.1} parent=5 // pred_check
        _
      $region68: #{encoder_forward.1} parent=5 // pred_check_branch
        %231 = sbr.rel (%p228) target = $region70
      $region69: #{encoder_forward.1} parent=5 // pred_region
        %s232 = ssub.s32 %s11, 1
        %s233 = sand.u32 %s38, 1
        %s234 = sand.u32 %s38, 1
        %s235 = smul.addr %s234, 32
        %s236 = scalar_lea.vmem [#allocation3], %s235
        // Predicated region
        $region71: #{encoder_forward.1} parent=69 // pred_check
          %p237 = pneg %p51
        $region72: #{encoder_forward.1} parent=69 // pred_check_branch
          %239 = sbr.rel (%p237) target = $region74
        $region73: #{encoder_forward.1} parent=69 // pred_region
          _
        $region74: #{encoder_forward.1} parent=69 // pred_fallthru
          _
        %s240 = sand.u32 %s38, 1
        %s241 = sand.u32 %s38, 1
        %s242 = smul.addr %s241, 32
        %s243 = scalar_lea.vmem [#allocation3], %s242
        %p244 = pneg %p51
        %p245 = pneg %p48
        %p246 = pneg %p72
        %p247 = pneg %p69
        %p248 = pneg %p93
        %p249 = pneg %p90
        %p250 = pneg %p114
        %p251 = pneg %p111
        %p252 = pneg %p140
        %p253 = pneg %p137
        %s254 = smul.u32 2, %s20
        %s255 = smul.u32 2, %s21
        %p257 = scmp.eq.s32.totalorder %s21, 0
        // Predicated region
        $region75: #{encoder_forward.1} parent=69 // pred_check
          %p258 = pneg %p257
        $region76: #{encoder_forward.1} parent=69 // pred_check_branch
          %260 = sbr.rel (%p258) target = $region78
        $region77: #{encoder_forward.1} parent=69 // pred_region
          %vm261 = vcmask 517120
          %262 = vst.msk [vmem:[#allocation2] sm:$0x3] %vm261, 0.0
        $region78: #{encoder_forward.1} parent=69 // pred_fallthru
          _
        %v263 = vld [vmem:[%s236] sm:$0xff]
        %v264 = vld [vmem:[%s236 + $0x8] sm:$0xff]
        %v265 = vld [vmem:[%s236 + $0x10] sm:$0xff]
        %v266 = vld [vmem:[%s236 + $0x18] sm:$0xff]
        %v267 = vld [vmem:[%s1] sm:$0xf]
        %v268 = vld [vmem:[%s1 + $0x4] sm:$0xf]
        %v269 = vld [vmem:[%s1 + $0x8] sm:$0xf]
        %v270 = vld [vmem:[%s1 + $0xc] sm:$0xf]
        %v271 = vld [vmem:[%s1 + $0x10] sm:$0xf]
        %v272 = vld [vmem:[%s1 + $0x14] sm:$0xf]
        %v273 = vld [vmem:[%s1 + $0x18] sm:$0xf]
        %v274 = vld [vmem:[%s1 + $0x1c] sm:$0xf]
        %v275 = vld [vmem:[%s1 + $0x20] sm:$0xf]
        %v276 = vld [vmem:[%s1 + $0x24] sm:$0xf]
        %v277 = vld [vmem:[%s1 + $0x28] sm:$0xf]
        %v278 = vld [vmem:[%s1 + $0x2c] sm:$0xf]
        %v279 = vld [vmem:[%s1 + $0x30] sm:$0xf]
        %v280 = vld [vmem:[%s1 + $0x34] sm:$0xf]
        %v281 = vld [vmem:[%s1 + $0x38] sm:$0xf]
        %v282 = vld [vmem:[%s1 + $0x3c] sm:$0xf]
        %v283 = vld [vmem:[%s1 + $0x40] sm:$0xf]
        %v284 = vld [vmem:[%s1 + $0x44] sm:$0xf]
        %v285 = vld [vmem:[%s1 + $0x48] sm:$0x3]
        %v290 = vunpack.c.l.b16 %v263
        %v291 = vunpack.c.h.b16 %v263
        %v292 = vunpack.c.l.b16 %v264
        %v293 = vunpack.c.h.b16 %v264
        %v294 = vunpack.c.l.b16 %v265
        %v295 = vunpack.c.h.b16 %v265
        %v296 = vunpack.c.l.b16 %v266
        %v297 = vunpack.c.h.b16 %v266
        %v298 = vpack.c.b16 %v292, %v290
        %v299 = vpack.c.b16 %v293, %v291
        %v300 = vpack.c.b16 %v296, %v294
        %v301 = vpack.c.b16 %v297, %v295
        %v323 = vunpack.c.l.b16 %v267
        %v324 = vunpack.c.l.b16 %v268
        %v325 = vunpack.c.l.b16 %v269
        %v326 = vunpack.c.l.b16 %v270
        %v327 = vunpack.c.l.b16 %v271
        %v328 = vunpack.c.l.b16 %v272
        %v329 = vunpack.c.l.b16 %v273
        %v330 = vunpack.c.l.b16 %v274
        %v331 = vunpack.c.l.b16 %v275
        %v332 = vunpack.c.l.b16 %v276
        %v333 = vunpack.c.l.b16 %v277
        %v334 = vunpack.c.l.b16 %v278
        %v335 = vunpack.c.l.b16 %v279
        %v336 = vunpack.c.l.b16 %v280
        %v337 = vunpack.c.l.b16 %v281
        %v338 = vunpack.c.l.b16 %v282
        %v339 = vunpack.c.l.b16 %v283
        %v340 = vunpack.c.l.b16 %v284
        %v341 = vunpack.c.l.b16 %v285
        %v342 = vpack.c.b16 %v324, %v323
        %v343 = vpack.c.b16 %v326, %v325
        %v344 = vpack.c.b16 %v328, %v327
        %v345 = vpack.c.b16 %v330, %v329
        %v346 = vpack.c.b16 %v332, %v331
        %v347 = vpack.c.b16 %v334, %v333
        %v348 = vpack.c.b16 %v336, %v335
        %v349 = vpack.c.b16 %v338, %v337
        %v350 = vpack.c.b16 %v340, %v339
        %v351 = vpack.c.b16 %v341, %v341
        %vm361 = vcmask 154624
        %v363 = vsel %vm361, %v299, 0
        %v366 = vsel %vm361, %v301, 0
        %vm368 = vcmask 1040384
        %vm369 = vcmask 1041408
        %v370 = vsel %vm368, 4294967295, 65535
        %v371 = vsel %vm369, %v370, 0
        %v373 = vand.u32 %v351, %v371
        %375 = vmatprep.subr.bf16.mxu0 0
        %376 = vmatpush1.bf16.msra.mxu0 %v342
        %377 = vmatprep.subr.bf16.mxu0 0
        %378 = vmatpush1.bf16.msra.mxu0 %v343
        %379 = vmatprep.subr.bf16.mxu0 0
        %380 = vmatpush1.bf16.msra.mxu0 %v344
        %381 = vmatprep.subr.bf16.mxu0 0
        %382 = vmatpush1.bf16.msra.mxu0 %v345
        %383 = vmatprep.subr.bf16.mxu0 0
        %384 = vmatpush1.bf16.msra.mxu0 %v346
        %385 = vmatprep.subr.bf16.mxu0 0
        %386 = vmatpush1.bf16.msra.mxu0 %v347
        %387 = vmatprep.subr.bf16.mxu0 0
        %388 = vmatpush1.bf16.msra.mxu0 %v348
        %389 = vmatprep.subr.bf16.mxu0 0
        %390 = vmatpush1.bf16.msra.mxu0 %v349
        %391 = vmatprep.subr.bf16.mxu0 0
        %392 = vmatpush1.bf16.msra.mxu0 %v350
        %393 = vmatprep.subr.bf16.mxu0 0
        %394 = vmatpush1.bf16.msra.mxu0 %v373
        %395 = vmatprep.subr.bf16.mxu0 0
        %396 = vmatpush1.bf16.msra.mxu0 0
        %397 = vmatprep.subr.bf16.mxu0 0
        %398 = vmatpush1.bf16.msra.mxu0 0
        %399 = vmatprep.subr.bf16.mxu0 0
        %400 = vmatpush1.bf16.msra.mxu0 0
        %401 = vmatprep.subr.bf16.mxu0 0
        %402 = vmatpush1.bf16.msra.mxu0 0
        %403 = vmatprep.subr.bf16.mxu0 0
        %404 = vmatpush1.bf16.msra.mxu0 0
        %405 = vmatprep.subr.bf16.mxu0 0
        %406 = vmatpush1.bf16.msra.mxu0 0
        %407 = vmatprep.mubr.bf16.mxu0 %v363
        %408 = vmatmul.mubr.bf16.gmra.mrb[0].mxu0 %v298
        %v409 = vpop.f32.mrb[0].mxu0
        %v410 = vadd.f32 0.0, %v409
        %v411 = vpop.f32.mrb[0].mxu0
        %v412 = vpop.f32.mrb[0].mxu0
        %v413 = vadd.f32 0.0, %v412
        %v414 = vpop.f32.mrb[0].mxu0
        %415 = vmatprep.mubr.bf16.mxu0 %v366
        %416 = vmatmul.mubr.bf16.gmra.mrb[0].mxu0 %v300
        %v417 = vpop.f32.mrb[0].mxu0
        %v418 = vadd.f32 0.0, %v417
        %v419 = vpop.f32.mrb[0].mxu0
        %v420 = vpop.f32.mrb[0].mxu0
        %v421 = vadd.f32 0.0, %v420
        %v422 = vpop.f32.mrb[0].mxu0
        %423 = vdwg.mxu0
        %v424 = vmax.f32 %v410, 0.0
        %v425 = vmax.f32 %v413, 0.0
        %v426 = vmax.f32 %v418, 0.0
        %v427 = vmax.f32 %v421, 0.0
        %v428 = vld [vmem:[#allocation2] sm:$0x3]
        %vm429 = vcmask 523264
        %v430 = vsel %vm429, %v424, 0.0
        %v431 = vsel %vm429, %v425, 0.0
        %v432 = vadd.f32 %v430, %v431
        %v433 = vrot.slane %v432, 4
        %v434 = vadd.f32 %v432, %v433
        %v435 = vrot.slane %v434, 2
        %v436 = vadd.f32 %v434, %v435
        %v437 = vrot.slane %v436, 1
        %v438 = vadd.f32 %v436, %v437
        %v439 = vsel %vm429, %v426, 0.0
        %v440 = vsel %vm429, %v427, 0.0
        %v441 = vadd.f32 %v439, %v440
        %v442 = vrot.slane %v441, 4
        %v443 = vadd.f32 %v441, %v442
        %v444 = vrot.slane %v443, 2
        %v445 = vadd.f32 %v443, %v444
        %v446 = vrot.slane %v445, 1
        %v447 = vadd.f32 %v445, %v446
        %vm450 = vcmask 1041409
        %v451 = vsel %vm450, %v447, %v438
        %v453 = vadd.f32 %v428, %v451
        %vm454 = vcmask 517120
        %455 = vst.msk [vmem:[#allocation2] sm:$0x3] %vm454, %v453
        %p456 = scmp.eq.s32.totalorder %s21, 3
        // Predicated region
        $region79: #{encoder_forward.1} parent=69 // pred_check
          %p457 = pneg %p456
        $region80: #{encoder_forward.1} parent=69 // pred_check_branch
          %459 = sbr.rel (%p457) target = $region82
        $region81: #{encoder_forward.1} parent=69 // pred_region
          %v460 = vld [vmem:[#allocation2] sm:$0x3]
          %v461 = vpack.c.bf16 %v460, %v460
          %v462 = vld [vmem:[%s2] sm:$0xff]
          %v463 = vld [vmem:[%s2 + $0x8] sm:$0xff]
          %v464 = vld [vmem:[%s2 + $0x10] sm:$0xff]
          %v465 = vld [vmem:[%s2 + $0x18] sm:$0xff]
          %v466 = vld [vmem:[%s2 + $0x20] sm:$0xff]
          %v467 = vld [vmem:[%s2 + $0x28] sm:$0xff]
          %v468 = vld [vmem:[%s2 + $0x30] sm:$0xff]
          %v469 = vld [vmem:[%s2 + $0x38] sm:$0xff]
          %v470 = vld [vmem:[%s2 + $0x40] sm:$0xff]
          %v471 = vld [vmem:[%s2 + $0x48] sm:$0xff]
          %v472 = vld [vmem:[%s2 + $0x50] sm:$0xff]
          %v473 = vld [vmem:[%s2 + $0x58] sm:$0xff]
          %v474 = vld [vmem:[%s2 + $0x60] sm:$0xff]
          %v475 = vld [vmem:[%s2 + $0x68] sm:$0xff]
          %v476 = vld [vmem:[%s2 + $0x70] sm:$0xff]
          %v477 = vld [vmem:[%s2 + $0x78] sm:$0xff]
          %v478 = vld [vmem:[%s2 + $0x80] sm:$0xff]
          %v479 = vld [vmem:[%s2 + $0x88] sm:$0xff]
          %v480 = vld [vmem:[%s2 + $0x90] sm:$0xff]
          %v481 = vld [vmem:[%s2 + $0x98] sm:$0xff]
          %v482 = vld [vmem:[%s2 + $0xa0] sm:$0xff]
          %v483 = vld [vmem:[%s2 + $0xa8] sm:$0xff]
          %v484 = vld [vmem:[%s2 + $0xb0] sm:$0xff]
          %v485 = vld [vmem:[%s2 + $0xb8] sm:$0xff]
          %v486 = vld [vmem:[%s2 + $0xc0] sm:$0xff]
          %v487 = vld [vmem:[%s2 + $0xc8] sm:$0xff]
          %v488 = vld [vmem:[%s2 + $0xd0] sm:$0xff]
          %v489 = vld [vmem:[%s2 + $0xd8] sm:$0xff]
          %v490 = vld [vmem:[%s2 + $0xe0] sm:$0xff]
          %v491 = vld [vmem:[%s2 + $0xe8] sm:$0xff]
          %v492 = vld [vmem:[%s2 + $0xf0] sm:$0xff]
          %v493 = vld [vmem:[%s2 + $0xf8] sm:$0xff]
          %v494 = vld [vmem:[%s3] sm:$0xff]
          %v496 = vlaneseq
          %v497 = vshrl.u32 %v496, 7
          %v498 = vsub.s32 0, %v497
          %v499 = vrot.slane %v494, %v498
          %v500 = vlaneseq
          %v501 = vshrl.u32 %v500, 7
          %v502 = vsub.s32 1, %v501
          %v503 = vrot.slane %v494, %v502
          %v504 = vlaneseq
          %v505 = vshrl.u32 %v504, 7
          %v506 = vsub.s32 2, %v505
          %v507 = vrot.slane %v494, %v506
          %v508 = vlaneseq
          %v509 = vshrl.u32 %v508, 7
          %v510 = vsub.s32 3, %v509
          %v511 = vrot.slane %v494, %v510
          %v512 = vlaneseq
          %v513 = vshrl.u32 %v512, 7
          %v514 = vsub.s32 4, %v513
          %v515 = vrot.slane %v494, %v514
          %v516 = vlaneseq
          %v517 = vshrl.u32 %v516, 7
          %v518 = vsub.s32 5, %v517
          %v519 = vrot.slane %v494, %v518
          %v520 = vlaneseq
          %v521 = vshrl.u32 %v520, 7
          %v522 = vsub.s32 6, %v521
          %v523 = vrot.slane %v494, %v522
          %v524 = vlaneseq
          %v525 = vshrl.u32 %v524, 7
          %v526 = vsub.s32 7, %v525
          %v527 = vrot.slane %v494, %v526
          %v568 = vunpack.c.l.b16 %v462
          %v569 = vunpack.c.h.b16 %v462
          %v570 = vunpack.c.l.b16 %v463
          %v571 = vunpack.c.h.b16 %v463
          %v572 = vunpack.c.l.b16 %v464
          %v573 = vunpack.c.h.b16 %v464
          %v574 = vunpack.c.l.b16 %v465
          %v575 = vunpack.c.h.b16 %v465
          %v576 = vunpack.c.l.b16 %v466
          %v577 = vunpack.c.h.b16 %v466
          %v578 = vunpack.c.l.b16 %v467
          %v579 = vunpack.c.h.b16 %v467
          %v580 = vunpack.c.l.b16 %v468
          %v581 = vunpack.c.h.b16 %v468
          %v582 = vunpack.c.l.b16 %v469
          %v583 = vunpack.c.h.b16 %v469
          %v584 = vunpack.c.l.b16 %v470
          %v585 = vunpack.c.h.b16 %v470
          %v586 = vunpack.c.l.b16 %v471
          %v587 = vunpack.c.h.b16 %v471
          %v588 = vunpack.c.l.b16 %v472
          %v589 = vunpack.c.h.b16 %v472
          %v590 = vunpack.c.l.b16 %v473
          %v591 = vunpack.c.h.b16 %v473
          %v592 = vunpack.c.l.b16 %v474
          %v593 = vunpack.c.h.b16 %v474
          %v594 = vunpack.c.l.b16 %v475
          %v595 = vunpack.c.h.b16 %v475
          %v596 = vunpack.c.l.b16 %v476
          %v597 = vunpack.c.h.b16 %v476
          %v598 = vunpack.c.l.b16 %v477
          %v599 = vunpack.c.h.b16 %v477
          %v600 = vunpack.c.l.b16 %v478
          %v601 = vunpack.c.h.b16 %v478
          %v602 = vunpack.c.l.b16 %v479
          %v603 = vunpack.c.h.b16 %v479
          %v604 = vunpack.c.l.b16 %v480
          %v605 = vunpack.c.h.b16 %v480
          %v606 = vunpack.c.l.b16 %v481
          %v607 = vunpack.c.h.b16 %v481
          %v608 = vunpack.c.l.b16 %v482
          %v609 = vunpack.c.h.b16 %v482
          %v610 = vunpack.c.l.b16 %v483
          %v611 = vunpack.c.h.b16 %v483
          %v612 = vunpack.c.l.b16 %v484
          %v613 = vunpack.c.h.b16 %v484
          %v614 = vunpack.c.l.b16 %v485
          %v615 = vunpack.c.h.b16 %v485
          %v616 = vunpack.c.l.b16 %v486
          %v617 = vunpack.c.h.b16 %v486
          %v618 = vunpack.c.l.b16 %v487
          %v619 = vunpack.c.h.b16 %v487
          %v620 = vunpack.c.l.b16 %v488
          %v621 = vunpack.c.h.b16 %v488
          %v622 = vunpack.c.l.b16 %v489
          %v623 = vunpack.c.h.b16 %v489
          %v624 = vunpack.c.l.b16 %v490
          %v625 = vunpack.c.h.b16 %v490
          %v626 = vunpack.c.l.b16 %v491
          %v627 = vunpack.c.h.b16 %v491
          %v628 = vunpack.c.l.b16 %v492
          %v629 = vunpack.c.h.b16 %v492
          %v630 = vunpack.c.l.b16 %v493
          %v631 = vunpack.c.h.b16 %v493
          %v632 = vpack.c.b16 %v576, %v568
          %v633 = vpack.c.b16 %v577, %v569
          %v634 = vpack.c.b16 %v578, %v570
          %v635 = vpack.c.b16 %v579, %v571
          %v636 = vpack.c.b16 %v580, %v572
          %v637 = vpack.c.b16 %v581, %v573
          %v638 = vpack.c.b16 %v582, %v574
          %v639 = vpack.c.b16 %v583, %v575
          %v640 = vpack.c.b16 %v592, %v584
          %v641 = vpack.c.b16 %v593, %v585
          %v642 = vpack.c.b16 %v594, %v586
          %v643 = vpack.c.b16 %v595, %v587
          %v644 = vpack.c.b16 %v596, %v588
          %v645 = vpack.c.b16 %v597, %v589
          %v646 = vpack.c.b16 %v598, %v590
          %v647 = vpack.c.b16 %v599, %v591
          %v648 = vpack.c.b16 %v608, %v600
          %v649 = vpack.c.b16 %v609, %v601
          %v650 = vpack.c.b16 %v610, %v602
          %v651 = vpack.c.b16 %v611, %v603
          %v652 = vpack.c.b16 %v612, %v604
          %v653 = vpack.c.b16 %v613, %v605
          %v654 = vpack.c.b16 %v614, %v606
          %v655 = vpack.c.b16 %v615, %v607
          %v656 = vpack.c.b16 %v624, %v616
          %v657 = vpack.c.b16 %v625, %v617
          %v658 = vpack.c.b16 %v626, %v618
          %v659 = vpack.c.b16 %v627, %v619
          %v660 = vpack.c.b16 %v628, %v620
          %v661 = vpack.c.b16 %v629, %v621
          %v662 = vpack.c.b16 %v630, %v622
          %v663 = vpack.c.b16 %v631, %v623
          %v697 = vsel %vm429, %v461, 0
          %699 = vmatprep.subr.bf16.mxu0 %v633
          %700 = vmatpush1.bf16.msra.mxu0 %v632
          %701 = vmatprep.subr.bf16.mxu0 %v641
          %702 = vmatpush1.bf16.msra.mxu0 %v640
          %703 = vmatprep.subr.bf16.mxu0 %v649
          %704 = vmatpush1.bf16.msra.mxu0 %v648
          %705 = vmatprep.subr.bf16.mxu0 %v657
          %706 = vmatpush1.bf16.msra.mxu0 %v656
          %707 = vmatprep.subr.bf16.mxu0 0
          %708 = vmatpush1.bf16.msra.mxu0 0
          %709 = vmatprep.subr.bf16.mxu0 0
          %710 = vmatpush1.bf16.msra.mxu0 0
          %711 = vmatprep.subr.bf16.mxu0 0
          %712 = vmatpush1.bf16.msra.mxu0 0
          %713 = vmatprep.subr.bf16.mxu0 0
          %714 = vmatpush1.bf16.msra.mxu0 0
          %715 = vmatprep.subr.bf16.mxu0 0
          %716 = vmatpush1.bf16.msra.mxu0 0
          %717 = vmatprep.subr.bf16.mxu0 0
          %718 = vmatpush1.bf16.msra.mxu0 0
          %719 = vmatprep.subr.bf16.mxu0 0
          %720 = vmatpush1.bf16.msra.mxu0 0
          %721 = vmatprep.subr.bf16.mxu0 0
          %722 = vmatpush1.bf16.msra.mxu0 0
          %723 = vmatprep.subr.bf16.mxu0 0
          %724 = vmatpush1.bf16.msra.mxu0 0
          %725 = vmatprep.subr.bf16.mxu0 0
          %726 = vmatpush1.bf16.msra.mxu0 0
          %727 = vmatprep.subr.bf16.mxu0 0
          %728 = vmatpush1.bf16.msra.mxu0 0
          %729 = vmatprep.subr.bf16.mxu0 0
          %730 = vmatpush1.bf16.msra.mxu0 0
          %731 = vmatprep.mubr.bf16.mxu0 0
          %732 = vmatmul.mubr.bf16.gmra.mrb[0].mxu0 %v697
          %v733 = vpop.f32.mrb[0].mxu0
          %v734 = vadd.f32 %v499, %v733
          %v735 = vpop.f32.mrb[0].mxu0
          %v736 = vadd.f32 %v503, %v735
          %v737 = vpop.f32.mrb[0].mxu0
          %v738 = vpop.f32.mrb[0].mxu0
          %739 = vdwg.mxu0
          %740 = vmatprep.subr.bf16.mxu0 %v635
          %741 = vmatpush1.bf16.msra.mxu0 %v634
          %742 = vmatprep.subr.bf16.mxu0 %v643
          %743 = vmatpush1.bf16.msra.mxu0 %v642
          %744 = vmatprep.subr.bf16.mxu0 %v651
          %745 = vmatpush1.bf16.msra.mxu0 %v650
          %746 = vmatprep.subr.bf16.mxu0 %v659
          %747 = vmatpush1.bf16.msra.mxu0 %v658
          %748 = vmatprep.subr.bf16.mxu0 0
          %749 = vmatpush1.bf16.msra.mxu0 0
          %750 = vmatprep.subr.bf16.mxu0 0
          %751 = vmatpush1.bf16.msra.mxu0 0
          %752 = vmatprep.subr.bf16.mxu0 0
          %753 = vmatpush1.bf16.msra.mxu0 0
          %754 = vmatprep.subr.bf16.mxu0 0
          %755 = vmatpush1.bf16.msra.mxu0 0
          %756 = vmatprep.subr.bf16.mxu0 0
          %757 = vmatpush1.bf16.msra.mxu0 0
          %758 = vmatprep.subr.bf16.mxu0 0
          %759 = vmatpush1.bf16.msra.mxu0 0
          %760 = vmatprep.subr.bf16.mxu0 0
          %761 = vmatpush1.bf16.msra.mxu0 0
          %762 = vmatprep.subr.bf16.mxu0 0
          %763 = vmatpush1.bf16.msra.mxu0 0
          %764 = vmatprep.subr.bf16.mxu0 0
          %765 = vmatpush1.bf16.msra.mxu0 0
          %766 = vmatprep.subr.bf16.mxu0 0
          %767 = vmatpush1.bf16.msra.mxu0 0
          %768 = vmatprep.subr.bf16.mxu0 0
          %769 = vmatpush1.bf16.msra.mxu0 0
          %770 = vmatprep.subr.bf16.mxu0 0
          %771 = vmatpush1.bf16.msra.mxu0 0
          %772 = vmatprep.mubr.bf16.mxu0 0
          %773 = vmatmul.mubr.bf16.gmra.mrb[0].mxu0 %v697
          %v774 = vpop.f32.mrb[0].mxu0
          %v775 = vadd.f32 %v507, %v774
          %v776 = vpop.f32.mrb[0].mxu0
          %v777 = vadd.f32 %v511, %v776
          %v778 = vpop.f32.mrb[0].mxu0
          %v779 = vpop.f32.mrb[0].mxu0
          %780 = vdwg.mxu0
          %781 = vmatprep.subr.bf16.mxu0 %v637
          %782 = vmatpush1.bf16.msra.mxu0 %v636
          %783 = vmatprep.subr.bf16.mxu0 %v645
          %784 = vmatpush1.bf16.msra.mxu0 %v644
          %785 = vmatprep.subr.bf16.mxu0 %v653
          %786 = vmatpush1.bf16.msra.mxu0 %v652
          %787 = vmatprep.subr.bf16.mxu0 %v661
          %788 = vmatpush1.bf16.msra.mxu0 %v660
          %789 = vmatprep.subr.bf16.mxu0 0
          %790 = vmatpush1.bf16.msra.mxu0 0
          %791 = vmatprep.subr.bf16.mxu0 0
          %792 = vmatpush1.bf16.msra.mxu0 0
          %793 = vmatprep.subr.bf16.mxu0 0
          %794 = vmatpush1.bf16.msra.mxu0 0
          %795 = vmatprep.subr.bf16.mxu0 0
          %796 = vmatpush1.bf16.msra.mxu0 0
          %797 = vmatprep.subr.bf16.mxu0 0
          %798 = vmatpush1.bf16.msra.mxu0 0
          %799 = vmatprep.subr.bf16.mxu0 0
          %800 = vmatpush1.bf16.msra.mxu0 0
          %801 = vmatprep.subr.bf16.mxu0 0
          %802 = vmatpush1.bf16.msra.mxu0 0
          %803 = vmatprep.subr.bf16.mxu0 0
          %804 = vmatpush1.bf16.msra.mxu0 0
          %805 = vmatprep.subr.bf16.mxu0 0
          %806 = vmatpush1.bf16.msra.mxu0 0
          %807 = vmatprep.subr.bf16.mxu0 0
          %808 = vmatpush1.bf16.msra.mxu0 0
          %809 = vmatprep.subr.bf16.mxu0 0
          %810 = vmatpush1.bf16.msra.mxu0 0
          %811 = vmatprep.subr.bf16.mxu0 0
          %812 = vmatpush1.bf16.msra.mxu0 0
          %813 = vmatprep.mubr.bf16.mxu0 0
          %814 = vmatmul.mubr.bf16.gmra.mrb[0].mxu0 %v697
          %v815 = vpop.f32.mrb[0].mxu0
          %v816 = vadd.f32 %v515, %v815
          %v817 = vpop.f32.mrb[0].mxu0
          %v818 = vadd.f32 %v519, %v817
          %v819 = vpop.f32.mrb[0].mxu0
          %v820 = vpop.f32.mrb[0].mxu0
          %821 = vdwg.mxu0
          %822 = vmatprep.subr.bf16.mxu0 %v639
          %823 = vmatpush1.bf16.msra.mxu0 %v638
          %824 = vmatprep.subr.bf16.mxu0 %v647
          %825 = vmatpush1.bf16.msra.mxu0 %v646
          %826 = vmatprep.subr.bf16.mxu0 %v655
          %827 = vmatpush1.bf16.msra.mxu0 %v654
          %828 = vmatprep.subr.bf16.mxu0 %v663
          %829 = vmatpush1.bf16.msra.mxu0 %v662
          %830 = vmatprep.subr.bf16.mxu0 0
          %831 = vmatpush1.bf16.msra.mxu0 0
          %832 = vmatprep.subr.bf16.mxu0 0
          %833 = vmatpush1.bf16.msra.mxu0 0
          %834 = vmatprep.subr.bf16.mxu0 0
          %835 = vmatpush1.bf16.msra.mxu0 0
          %836 = vmatprep.subr.bf16.mxu0 0
          %837 = vmatpush1.bf16.msra.mxu0 0
          %838 = vmatprep.subr.bf16.mxu0 0
          %839 = vmatpush1.bf16.msra.mxu0 0
          %840 = vmatprep.subr.bf16.mxu0 0
          %841 = vmatpush1.bf16.msra.mxu0 0
          %842 = vmatprep.subr.bf16.mxu0 0
          %843 = vmatpush1.bf16.msra.mxu0 0
          %844 = vmatprep.subr.bf16.mxu0 0
          %845 = vmatpush1.bf16.msra.mxu0 0
          %846 = vmatprep.subr.bf16.mxu0 0
          %847 = vmatpush1.bf16.msra.mxu0 0
          %848 = vmatprep.subr.bf16.mxu0 0
          %849 = vmatpush1.bf16.msra.mxu0 0
          %850 = vmatprep.subr.bf16.mxu0 0
          %851 = vmatpush1.bf16.msra.mxu0 0
          %852 = vmatprep.subr.bf16.mxu0 0
          %853 = vmatpush1.bf16.msra.mxu0 0
          %854 = vmatprep.mubr.bf16.mxu0 0
          %855 = vmatmul.mubr.bf16.gmra.mrb[0].mxu0 %v697
          %v856 = vpop.f32.mrb[0].mxu0
          %v857 = vadd.f32 %v523, %v856
          %v858 = vpop.f32.mrb[0].mxu0
          %v859 = vadd.f32 %v527, %v858
          %v860 = vpop.f32.mrb[0].mxu0
          %v861 = vpop.f32.mrb[0].mxu0
          %862 = vdwg.mxu0
          %v871 = vcombine.low %v734, %v736
          %v872 = vcombine.low %v775, %v777
          %v874 = vunpack.c.l.s4 1983009808
          %v875 = vunpack.c.0.s8 %v874
          %v876 = vlaneseq
          %v877 = vshrl.u32 %v876, 7
          %v878 = vsub.s32 %v875, %v877
          %v879 = vrot.slane %v871, %v878
          %v881 = vunpack.c.l.s4 1983009808
          %v882 = vunpack.c.0.s8 %v881
          %v883 = vlaneseq
          %v884 = vshrl.u32 %v883, 7
          %v885 = vsub.s32 %v882, %v884
          %v886 = vrot.slane %v872, %v885
          %v887 = vcombine.low %v879, %v886
          %v888 = vcombine.low %v816, %v818
          %v889 = vcombine.low %v857, %v859
          %v891 = vunpack.c.l.s4 1983009808
          %v892 = vunpack.c.0.s8 %v891
          %v893 = vlaneseq
          %v894 = vshrl.u32 %v893, 7
          %v895 = vsub.s32 %v892, %v894
          %v896 = vrot.slane %v888, %v895
          %v898 = vunpack.c.l.s4 1983009808
          %v899 = vunpack.c.0.s8 %v898
          %v900 = vlaneseq
          %v901 = vshrl.u32 %v900, 7
          %v902 = vsub.s32 %v899, %v901
          %v903 = vrot.slane %v889, %v902
          %v904 = vcombine.low %v896, %v903
          %907 = vst [vmem:[#allocation4] sm:$0xff] %v887
          %908 = vst [vmem:[#allocation4 + $0x8] sm:$0xff] %v904
        $region82: #{encoder_forward.1} parent=69 // pred_fallthru
          _
        // Predicated region
        $region83: #{encoder_forward.1} parent=69 // pred_check
          %p909 = pneg %p137
        $region84: #{encoder_forward.1} parent=69 // pred_check_branch
          %911 = sbr.rel (%p909) target = $region86
        $region85: #{encoder_forward.1} parent=69 // pred_region
          %s913 = ssub.s32 256, 256
          %914 = vsyncadd [#allocation5], %s913
          %s915 = smul.addr %s20, 8
          %s916 = smul.addr %s915, 32
          %s917 = scalar_lea.hbm %s4, %s916
          %s919 = sshll.u32 [#allocation4], 4
          %s920 = int_to_ptr.vmem [resolvable:$true] %s919
          %922 = dma.vmem_to_hbm [thread:$0]  %s920, 256, %s917, [#allocation5]
        $region86: #{encoder_forward.1} parent=69 // pred_fallthru
          _
        // Predicated region
        $region87: #{encoder_forward.1} parent=69 // pred_check
          %p923 = pneg %p137
        $region88: #{encoder_forward.1} parent=69 // pred_check_branch
          %925 = sbr.rel (%p923) target = $region90
        $region89: #{encoder_forward.1} parent=69 // pred_region
          %926 = dma.done [#allocation5], 256
        $region90: #{encoder_forward.1} parent=69 // pred_fallthru
          _
      $region70: #{encoder_forward.1} parent=5 // pred_fallthru
        _
      %p927 = scmp.le.s32.totalorder 2, %s11
      // Predicated region
      $region91: #{encoder_forward.1} parent=5 // pred_check
        %p928 = pneg %p927
      $region92: #{encoder_forward.1} parent=5 // pred_check_branch
        %930 = sbr.rel (%p928) target = $region94
      $region93: #{encoder_forward.1} parent=5 // pred_region
        %s931 = ssub.s32 %s11, 2
      $region94: #{encoder_forward.1} parent=5 // pred_fallthru
        _
    $region6: #{encoder_forward.1} parent=1 // loop_footer
      %s15 = sadd.s32 1, %s11
    $region7: #{encoder_forward.1} parent=1 // loop_footer_branch
      %10 = sbr.rel target = $region3
    $region8: #{encoder_forward.1} parent=1 // loop_exit
      _
    %932 = vsyncpa [#allocation5], 1
    %s933 = scalar_lea.sflag [#allocation5], 1
    %934 = vsyncpa %s933, 1

</llo_original>
